<compile_context>
chip_gen: v7x
topology: tpu7x:2x2x1
jax: 0.10.0
libtpu: 0.0.40
codegen_flags: <defaults>
</compile_context>

<pallas_src>
import functools

import jax
import jax.numpy as jnp
from jax import lax
from jax.experimental import pallas as pl
from jax.experimental.pallas import tpu as pltpu

_LANE = 128


# --------------------------- small static helpers ----------------------------

def _halo_width(shift, tile_t):
    """Smallest multiple of 128 that is >= shift and divides tile_t."""
    hw = _LANE * ((shift + _LANE - 1) // _LANE)
    while tile_t % hw:
        hw += _LANE
    return hw


def _tpu_defaults():
    """(tile_t, vmem_limit_bytes) chosen from the local TPU generation."""
    try:
        vmem = pltpu.get_tpu_info().vmem_capacity_bytes
    except Exception:
        vmem = 64 * 1024 * 1024                 # conservative (v7x-sized VMEM)
    if vmem >= 100 * 1024 * 1024:               # v5e / v6e: 128 MiB VMEM
        return 4096, 96 * 1024 * 1024
    return 2048, 44 * 1024 * 1024               # v7x: 64 MiB physical VMEM


@functools.lru_cache(maxsize=None)
def _roll_splice_ok():
    """One-time probe: does pltpu.roll on bf16 lower cleanly and match
    jnp.roll semantics?  If not, the splice falls back to a lane concat."""
    try:
        n, k = 256, 5

        def kern(x_ref, o_ref):
            o_ref[...] = pltpu.roll(x_ref[...], n - k, axis=1)

        x = (jnp.arange(16 * n, dtype=jnp.float32)
             .reshape(16, n).astype(jnp.bfloat16))
        out = pl.pallas_call(
            kern, out_shape=jax.ShapeDtypeStruct((16, n), jnp.bfloat16))(x)
        return bool(jnp.array_equal(out, jnp.roll(x, n - k, axis=1)))
    except Exception:
        return False


def _lane_shift_splice(cur, halo, shift, use_roll):
    """concat(cur[:, shift:], halo[:, :shift]) along lanes.

    Roll path: two XLU rolls + a VALU select (keeps vld/vst slots free).
    Fallback: plain lane concat (known-good lowering)."""
    n, tt = cur.shape
    if not use_roll:
        return jnp.concatenate([cur[:, shift:], halo[:, :shift]], axis=1)
    hw = halo.shape[1]
    if hw < tt:  # lane-aligned zero pad (hw and tt are multiples of 128)
        halo = jnp.concatenate(
            [halo, jnp.zeros((n, tt - hw), halo.dtype)], axis=1)
    rolled_cur = pltpu.roll(cur, tt - shift, axis=1)    # out[i] = cur[(i+shift) % tt]
    rolled_halo = pltpu.roll(halo, tt - shift, axis=1)  # out[i] = halo[i+shift-tt] for tail lanes
    lane = lax.broadcasted_iota(jnp.int32, (n, tt), 1)
    return jnp.where(lane < tt - shift, rolled_cur, rolled_halo)


# ------------------------------- kernel bodies -------------------------------

def _gated_core(tap0, tap1, c, wx0, wx1, wc, bias, w2, n_res):
    """Gated-residual compute on one (channels x time) tile.

    tap0, tap1 : (R, tt) bf16   x[., t] and x[., t + dil]
    c          : (C, tt) bf16   cond[., t + cond_lead]
    wx0/wx1    : (2D, R) bf16   [conv_signal ; conv_gate] taps 0 / 1
    wc         : (2D, C) bf16   [proj_signal ; proj_gate]
    bias       : (2D, 1) f32
    w2         : (R+S, D) bf16  [dil_res ; dil_skp]
    """
    f32 = jnp.float32
    fg = (jnp.dot(wx0, tap0, preferred_element_type=f32)
          + jnp.dot(wx1, tap1, preferred_element_type=f32)
          + jnp.dot(wc, c, preferred_element_type=f32))
    fg = fg + bias                                            # broadcast over lanes
    n_dil = wx0.shape[0] // 2
    z = jnp.tanh(fg[:n_dil, :]) * jax.nn.sigmoid(fg[n_dil:, :])          # (D, tt) f32
    out = jnp.dot(w2, z.astype(w2.dtype), preferred_element_type=f32)    # (R+S, tt)
    sig = out[:n_res, :] + tap1.astype(f32)   # residual add == x[:, left_wing_size:]
    skp = out[n_res:, :]
    return sig, skp


def _grcc_single_kernel(dil, cond_lead, t_out, n_res,
                        x_ref, c_ref, wx0_ref, wx1_ref, wc_ref, b_ref, w2_ref,
                        sig_ref, skp_ref):
    """Single time-tile (small T): whole (channels, T) block resident."""
    tap0 = x_ref[:, pl.ds(0, t_out)]
    tap1 = x_ref[:, pl.ds(dil, t_out)]
    c = c_ref[:, pl.ds(cond_lead, t_out)]
    sig, skp = _gated_core(tap0, tap1, c, wx0_ref[...], wx1_ref[...], wc_ref[...],
                           b_ref[...], w2_ref[...], n_res)
    sig_ref[...] = sig.astype(sig_ref.dtype)
    skp_ref[...] = skp.astype(skp_ref.dtype)


def _grcc_tiled_kernel(dq, dr, cl_mod, n_res, use_roll, *refs):
    """Time-tiled path.  Ref order (presence is static per config):
       x_cur, [x_shift if dq>=1], [x_halo if dr>0],
       c_cur, [c_halo if cl_mod>0], wx0, wx1, wc, bias, w2, sig_out, skp_out."""
    i = 0
    x_cur = refs[i]; i += 1
    x_shift = None
    if dq >= 1:
        x_shift = refs[i]; i += 1
    x_halo = None
    if dr > 0:
        x_halo = refs[i]; i += 1
    c_cur = refs[i]; i += 1
    c_halo = None
    if cl_mod > 0:
        c_halo = refs[i]; i += 1
    wx0_ref, wx1_ref, wc_ref, b_ref, w2_ref = refs[i:i + 5]
    sig_ref, skp_ref = refs[i + 5], refs[i + 6]

    tap0 = x_cur[...]
    base = x_shift[...] if x_shift is not None else tap0
    tap1 = base if dr == 0 else _lane_shift_splice(base, x_halo[...], dr, use_roll)
    cc = c_cur[...]
    c = cc if cl_mod == 0 else _lane_shift_splice(cc, c_halo[...], cl_mod, use_roll)

    sig, skp = _gated_core(tap0, tap1, c, wx0_ref[...], wx1_ref[...], wc_ref[...],
                           b_ref[...], w2_ref[...], n_res)
    sig_ref[...] = sig.astype(sig_ref.dtype)
    skp_ref[...] = skp.astype(skp_ref.dtype)


# --------------------------------- wrapper -----------------------------------

def gated_residual_cond_conv(x, cond, params, *, dil, cond_lead, skip_lead,
                             left_wing_size, filter_sz=2, tile_t=None,
                             out_dtype=jnp.bfloat16, trim_skip=True):
    """x: (B, R, T), cond: (B, C, Tc) -- PyTorch Conv1d NCL layout, kept end to end.

    Returns sig: (B, R, T_out), skp: (B, S, T_out - skip_lead) (or (B, S, T_out)
    when trim_skip=False -- ignore the first skip_lead columns), with
    T_out = T - (filter_sz - 1) * dil.  Outputs are bf16 by default; if skips /
    residuals are summed across many layers keep that accumulation in f32
    downstream.
    """
    assert filter_sz == 2, "kernel specialized for filter_sz=2 (WaveNet default)"
    assert left_wing_size == (filter_sz - 1) * dil

    B, R, T = x.shape
    _, C, Tc = cond.shape
    D = params["w_sig"].shape[0]
    S = params["w_skp"].shape[0]
    t_out = T - (filter_sz - 1) * dil
    assert Tc >= cond_lead + t_out

    bf16 = jnp.bfloat16
    # bf16 activations: cast hoisted -- bf16 inputs pass straight through.
    x_bf = x if x.dtype == bf16 else x.astype(bf16)
    c_bf = cond if cond.dtype == bf16 else cond.astype(bf16)

    # Pre-split fused weights (built at trace time; no in-kernel slicing/concat).
    wx0 = jnp.concatenate([params["w_sig"][:, :, 0], params["w_gate"][:, :, 0]],
                          axis=0).astype(bf16)                      # (2D, R)  tap 0
    wx1 = jnp.concatenate([params["w_sig"][:, :, 1], params["w_gate"][:, :, 1]],
                          axis=0).astype(bf16)                      # (2D, R)  tap +dil
    wc = jnp.concatenate([params["p_sig"][:, :, 0], params["p_gate"][:, :, 0]],
                         axis=0).astype(bf16)                       # (2D, C)
    bias = jnp.concatenate([params["b_sig"], params["b_gate"]]
                           ).reshape(2 * D, 1).astype(jnp.float32)  # (2D, 1)
    w2 = jnp.concatenate([params["w_res"][:, :, 0], params["w_skp"][:, :, 0]],
                         axis=0).astype(bf16)                       # (R+S, D)

    default_tile, vmem_limit = _tpu_defaults()
    if tile_t is None:
        tile_t = default_tile
        if B == 1 and t_out >= 2 * _LANE:
            # Keep >= 2 time tiles so both v7x TensorCores are fed at batch 1.
            tile_t = min(tile_t, max(_LANE, (t_out // 2) // _LANE * _LANE))
    single = (t_out <= tile_t) or (tile_t % _LANE != 0)

    out_shape = (jax.ShapeDtypeStruct((B, R, t_out), out_dtype),
                 jax.ShapeDtypeStruct((B, S, t_out), out_dtype))
    out_bytes = jnp.finfo(out_dtype).bits // 8
    cost = pl.CostEstimate(
        flops=2 * B * t_out * (2 * D * (2 * R + C) + (R + S) * D),
        transcendentals=2 * B * D * t_out,
        bytes_accessed=(2 * B * (R * T + C * t_out)
                        + 2 * (2 * D * (2 * R + C) + (R + S) * D) + 8 * D
                        + out_bytes * B * (R + S) * t_out))

    if single:
        kernel = functools.partial(_grcc_single_kernel, dil, cond_lead, t_out, R)
        grid = (B,)
        in_specs = [
            pl.BlockSpec((None, R, T), lambda b: (b, 0, 0)),      # x    (full T)
            pl.BlockSpec((None, C, Tc), lambda b: (b, 0, 0)),     # cond (full Tc)
            pl.BlockSpec((2 * D, R), lambda b: (0, 0)),
            pl.BlockSpec((2 * D, R), lambda b: (0, 0)),
            pl.BlockSpec((2 * D, C), lambda b: (0, 0)),
            pl.BlockSpec((2 * D, 1), lambda b: (0, 0)),
            pl.BlockSpec((R + S, D), lambda b: (0, 0)),
        ]
        out_specs = (pl.BlockSpec((None, R, t_out), lambda b: (b, 0, 0)),
                     pl.BlockSpec((None, S, t_out), lambda b: (b, 0, 0)))
        dim_sem = ("parallel",)
        args = [x_bf, c_bf, wx0, wx1, wc, bias, w2]
    else:
        n_t = pl.cdiv(t_out, tile_t)
        nbx = pl.cdiv(T, tile_t)
        ncb = pl.cdiv(Tc, tile_t)
        dq, dr = divmod(dil, tile_t)
        cl_div, cl_mod = divmod(cond_lead, tile_t)
        need_splice = (dr > 0) or (cl_mod > 0)
        use_roll = _roll_splice_ok() if need_splice else False

        kernel = functools.partial(_grcc_tiled_kernel, dq, dr, cl_mod, R, use_roll)
        grid = (B, n_t)

        in_specs = [pl.BlockSpec((None, R, tile_t), lambda b, t: (b, 0, t))]
        args = [x_bf]
        if dq >= 1:   # dil >= tile_t: whole-tile shifted x stream
            in_specs.append(pl.BlockSpec(
                (None, R, tile_t),
                lambda b, t, _dq=dq, _n=nbx: (b, 0, jnp.minimum(t + _dq, _n - 1))))
            args.append(x_bf)
        if dr > 0:    # narrow halo block instead of a full duplicate next block
            hwx = _halo_width(dr, tile_t)
            rx = tile_t // hwx
            nhx = pl.cdiv(T, hwx)
            in_specs.append(pl.BlockSpec(
                (None, R, hwx),
                lambda b, t, _dq=dq, _r=rx, _n=nhx:
                    (b, 0, jnp.minimum((t + _dq + 1) * _r, _n - 1))))
            args.append(x_bf)
        in_specs.append(pl.BlockSpec(
            (None, C, tile_t),
            lambda b, t, _cd=cl_div, _n=ncb: (b, 0, jnp.minimum(t + _cd, _n - 1))))
        args.append(c_bf)
        if cl_mod > 0:  # cond halo only when cond_lead is not tile-aligned
            hwc = _halo_width(cl_mod, tile_t)
            rc = tile_t // hwc
            nhc = pl.cdiv(Tc, hwc)
            in_specs.append(pl.BlockSpec(
                (None, C, hwc),
                lambda b, t, _cd=cl_div, _r=rc, _n=nhc:
                    (b, 0, jnp.minimum((t + _cd + 1) * _r, _n - 1))))
            args.append(c_bf)
        in_specs += [
            pl.BlockSpec((2 * D, R), lambda b, t: (0, 0)),
            pl.BlockSpec((2 * D, R), lambda b, t: (0, 0)),
            pl.BlockSpec((2 * D, C), lambda b, t: (0, 0)),
            pl.BlockSpec((2 * D, 1), lambda b, t: (0, 0)),
            pl.BlockSpec((R + S, D), lambda b, t: (0, 0)),
        ]
        args += [wx0, wx1, wc, bias, w2]
        out_specs = (pl.BlockSpec((None, R, tile_t), lambda b, t: (b, 0, t)),
                     pl.BlockSpec((None, S, tile_t), lambda b, t: (b, 0, t)))
        dim_sem = ("parallel", "parallel")  # feed both TensorCores on v7x

    sig, skp_full = pl.pallas_call(
        kernel,
        out_shape=out_shape,
        grid=grid,
        in_specs=in_specs,
        out_specs=out_specs,
        compiler_params=pltpu.CompilerParams(
            dimension_semantics=dim_sem,
            vmem_limit_bytes=vmem_limit),
        cost_estimate=cost,
        # NOTE: deeper buffering (pipeline_mode=pl.Buffered(3)) is a last resort:
        # the steady state is HBM-bandwidth-bound, so cut bytes first.
    )(*args)

    if trim_skip and skip_lead:
        # Module-exact shape.  Stacked callers should pass trim_skip=False and
        # fold skip_lead into their skip-sum to avoid this extra HBM pass.
        skp = skp_full[:, :, skip_lead:]
    else:
        skp = skp_full
    return sig, skp


# --------------------------- reference & self-test ---------------------------

def reference(x, cond, params, *, dil, cond_lead, skip_lead, left_wing_size):
    """Pure-JAX reference mirroring the PyTorch forward (lax.conv == nn.Conv1d)."""
    dn = ("NCH", "OIH", "NCH")

    def conv1d(inp, w, rhs_dil=1):
        return lax.conv_general_dilated(
            inp, w, window_strides=(1,), padding="VALID",
            rhs_dilation=(rhs_dil,), dimension_numbers=dn)

    t_out = x.shape[-1] - dil
    cnd = cond[:, :, cond_lead:cond_lead + t_out]
    filt = (conv1d(x, params["w_sig"], dil) + params["b_sig"][None, :, None]
            + conv1d(cnd, params["p_sig"]))
    gate = (conv1d(x, params["w_gate"], dil) + params["b_gate"][None, :, None]
            + conv1d(cnd, params["p_gate"]))
    z = jnp.tanh(filt) * jax.nn.sigmoid(gate)
    sig = conv1d(z, params["w_res"]) + x[:, :, left_wing_size:]
    skp = conv1d(z[:, :, skip_lead:], params["w_skp"])
    return sig, skp


def _round_bf16(a):
    return a.astype(jnp.bfloat16).astype(jnp.float32)


def make_params(key, C, R, D, S):
    ks = jax.random.split(key, 8)
    s = 0.2
    return {
        "w_sig":  jax.random.normal(ks[0], (D, R, 2), jnp.float32) * s,
        "b_sig":  jax.random.normal(ks[1], (D,), jnp.float32) * 0.1,
        "w_gate": jax.random.normal(ks[2], (D, R, 2), jnp.float32) * s,
        "b_gate": jax.random.normal(ks[3], (D,), jnp.float32) * 0.1,
        "p_sig":  jax.random.normal(ks[4], (D, C, 1), jnp.float32) * s,
        "p_gate": jax.random.normal(ks[5], (D, C, 1), jnp.float32) * s,
        "w_res":  jax.random.normal(ks[6], (R, D, 1), jnp.float32) * s,
        "w_skp":  jax.random.normal(ks[7], (S, D, 1), jnp.float32) * s,
    }


def run_case(key, *, B, C, R, D, S, T, dil, cond_lead, skip_lead, tile_t=None):
    kp, kx, kc = jax.random.split(key, 3)
    params = make_params(kp, C, R, D, S)
    t_out = T - dil
    Tc = cond_lead + t_out  # tight cond length: stresses halo / edge clamping
    x = jax.random.normal(kx, (B, R, T), jnp.float32)
    cond = jax.random.normal(kc, (B, C, Tc), jnp.float32)
    left_wing_size = dil

    # bf16 activation I/O: cast once outside (as a stacked caller would).
    sig, skp = gated_residual_cond_conv(
        x.astype(jnp.bfloat16), cond.astype(jnp.bfloat16), params,
        dil=dil, cond_lead=cond_lead, skip_lead=skip_lead,
        left_wing_size=left_wing_size, tile_t=tile_t)
    jax.block_until_ready((sig, skp))

    assert sig.shape == (B, R, t_out), sig.shape
    assert skp.shape == (B, S, t_out - skip_lead), skp.shape
    assert sig.dtype == jnp.bfloat16 and skp.dtype == jnp.bfloat16

    # Reference sees the same bf16-rounded operands the kernel sees (biases f32).
    params_r = {k: (v if k.startswith("b_") else _round_bf16(v))
                for k, v in params.items()}
    sig_ref, skp_ref = reference(
        _round_bf16(x), _round_bf16(cond), params_r, dil=dil,
        cond_lead=cond_lead, skip_lead=skip_lead, left_wing_size=left_wing_size)

    sig32 = sig.astype(jnp.float32)
    skp32 = skp.astype(jnp.float32)
    # bf16 operands + bf16 z recast + bf16 output rounding => ~1e-2 scale.
    assert jnp.allclose(sig32, sig_ref, atol=5e-2, rtol=5e-2), \
        float(jnp.max(jnp.abs(sig32 - sig_ref)))
    assert jnp.allclose(skp32, skp_ref, atol=5e-2, rtol=5e-2), \
        float(jnp.max(jnp.abs(skp32 - skp_ref)))


if __name__ == "__main__":
    root = jax.random.PRNGKey(0)
    k1, k2, k3, k4, k5 = jax.random.split(root, 5)

    # 1) Small config matching the original module test: single-tile path, R=8.
    run_case(k1, B=2, C=6, R=8, D=8, S=8, T=16, dil=2, cond_lead=2, skip_lead=0)

    # 2) 16-aligned channels, still single-tile path.
    run_case(k2, B=2, C=6, R=16, D=16, S=16, T=32, dil=2, cond_lead=2, skip_lead=0)

    # 3) Tiled path: x- and cond-halo blocks, tight Tc, ragged last tile,
    #    skip_lead > 0 (non-final GRCC layer behaviour).
    run_case(k3, B=2, C=6, R=16, D=16, S=16, T=300, dil=4, cond_lead=4,
             skip_lead=3, tile_t=128)

    # 4) dil >= tile_t (dq=1, dr=2): extra shifted x stream + x halo, no cond
    #    halo (cond_lead == 0), batch 1.
    run_case(k4, B=1, C=6, R=16, D=16, S=16, T=520, dil=130, cond_lead=0,
             skip_lead=0, tile_t=128)

    # 5) dil an exact multiple of tile_t (no x halo) with cond_lead > tile_t
    #    (cl_div=1, cl_mod=2 -> cond halo), skip_lead > 0.
    run_case(k5, B=1, C=6, R=16, D=16, S=16, T=640, dil=128, cond_lead=130,
             skip_lead=2, tile_t=128)

    print("KERNEL_OK")
</pallas_src>

<mosaic_0001>
module attributes {stable_mosaic.version = 11 : i64} {
  func.func @_grcc_single_kernel(%arg0: i32, %arg1: memref<1x8x16xbf16, #tpu.memory_space<vmem>>, %arg2: memref<1x6x16xbf16, #tpu.memory_space<vmem>>, %arg3: memref<16x8xbf16, #tpu.memory_space<vmem>>, %arg4: memref<16x8xbf16, #tpu.memory_space<vmem>>, %arg5: memref<16x6xbf16, #tpu.memory_space<vmem>>, %arg6: memref<16x1xf32, #tpu.memory_space<vmem>>, %arg7: memref<16x8xbf16, #tpu.memory_space<vmem>>, %arg8: memref<1x8x14xbf16, #tpu.memory_space<vmem>>, %arg9: memref<1x8x14xbf16, #tpu.memory_space<vmem>>) attributes {dimension_semantics = [#tpu.dimension_semantics<parallel>], iteration_bounds = array<i64: 2>, scalar_prefetch = 0 : i64, scratch_operands = 0 : i64, tpu.core_type = #tpu.core_type<tc>, window_params = [{transform_indices = @transform_0, window_bounds = array<i64: 1, 8, 16>}, {transform_indices = @transform_1, window_bounds = array<i64: 1, 6, 16>}, {pipeline_mode = #tpu.pipeline_mode<synchronous>, transform_indices = @transform_2, window_bounds = array<i64: 16, 8>}, {pipeline_mode = #tpu.pipeline_mode<synchronous>, transform_indices = @transform_3, window_bounds = array<i64: 16, 8>}, {pipeline_mode = #tpu.pipeline_mode<synchronous>, transform_indices = @transform_4, window_bounds = array<i64: 16, 6>}, {pipeline_mode = #tpu.pipeline_mode<synchronous>, transform_indices = @transform_5, window_bounds = array<i64: 16, 1>}, {pipeline_mode = #tpu.pipeline_mode<synchronous>, transform_indices = @transform_6, window_bounds = array<i64: 16, 8>}, {transform_indices = @transform_7, window_bounds = array<i64: 1, 8, 14>}, {transform_indices = @transform_8, window_bounds = array<i64: 1, 8, 14>}]} {
    %c0 = arith.constant 0 : index
    %c0_0 = arith.constant 0 : index
    %c0_1 = arith.constant 0 : index
    %0 = vector.load %arg1[%c0, %c0_0, %c0_1] : memref<1x8x16xbf16, #tpu.memory_space<vmem>>, vector<1x8x14xbf16>
    %1 = vector.shape_cast %0 : vector<1x8x14xbf16> to vector<8x14xbf16>
    %c0_2 = arith.constant 0 : index
    %c0_3 = arith.constant 0 : index
    %c2 = arith.constant 2 : index
    %2 = vector.load %arg1[%c0_2, %c0_3, %c2] : memref<1x8x16xbf16, #tpu.memory_space<vmem>>, vector<1x8x14xbf16>
    %3 = vector.shape_cast %2 : vector<1x8x14xbf16> to vector<8x14xbf16>
    %c0_4 = arith.constant 0 : index
    %c0_5 = arith.constant 0 : index
    %c2_6 = arith.constant 2 : index
    %4 = vector.load %arg2[%c0_4, %c0_5, %c2_6] : memref<1x6x16xbf16, #tpu.memory_space<vmem>>, vector<1x6x14xbf16>
    %5 = vector.shape_cast %4 : vector<1x6x14xbf16> to vector<6x14xbf16>
    %c0_7 = arith.constant 0 : index
    %c0_8 = arith.constant 0 : index
    %6 = vector.load %arg3[%c0_7, %c0_8] : memref<16x8xbf16, #tpu.memory_space<vmem>>, vector<16x8xbf16>
    %c0_9 = arith.constant 0 : index
    %c0_10 = arith.constant 0 : index
    %7 = vector.load %arg4[%c0_9, %c0_10] : memref<16x8xbf16, #tpu.memory_space<vmem>>, vector<16x8xbf16>
    %c0_11 = arith.constant 0 : index
    %c0_12 = arith.constant 0 : index
    %8 = vector.load %arg5[%c0_11, %c0_12] : memref<16x6xbf16, #tpu.memory_space<vmem>>, vector<16x6xbf16>
    %c0_13 = arith.constant 0 : index
    %c0_14 = arith.constant 0 : index
    %9 = vector.load %arg6[%c0_13, %c0_14] : memref<16x1xf32, #tpu.memory_space<vmem>>, vector<16x1xf32>
    %c0_15 = arith.constant 0 : index
    %c0_16 = arith.constant 0 : index
    %10 = vector.load %arg7[%c0_15, %c0_16] : memref<16x8xbf16, #tpu.memory_space<vmem>>, vector<16x8xbf16>
    %cst = arith.constant dense<0.000000e+00> : vector<16x14xf32>
    %11 = tpu.matmul %6, %1, %cst {dimension_numbers = #tpu.dot_dimension_numbers<[1], [0], [0], [1], [0, 0, 1, 1], [], []>} : vector<16x8xbf16>, vector<8x14xbf16>, vector<16x14xf32> -> vector<16x14xf32>
    %cst_17 = arith.constant dense<0.000000e+00> : vector<16x14xf32>
    %12 = tpu.matmul %7, %3, %cst_17 {dimension_numbers = #tpu.dot_dimension_numbers<[1], [0], [0], [1], [0, 0, 1, 1], [], []>} : vector<16x8xbf16>, vector<8x14xbf16>, vector<16x14xf32> -> vector<16x14xf32>
    %13 = arith.addf %11, %12 : vector<16x14xf32>
    %cst_18 = arith.constant dense<0.000000e+00> : vector<16x14xf32>
    %14 = tpu.matmul %8, %5, %cst_18 {dimension_numbers = #tpu.dot_dimension_numbers<[1], [0], [0], [1], [0, 0, 1, 1], [], []>} : vector<16x6xbf16>, vector<6x14xbf16>, vector<16x14xf32> -> vector<16x14xf32>
    %15 = arith.addf %13, %14 : vector<16x14xf32>
    %16 = vector.broadcast %9 : vector<16x1xf32> to vector<16x14xf32>
    %17 = arith.addf %15, %16 : vector<16x14xf32>
    %18 = vector.extract_strided_slice %17 {offsets = [0, 0], sizes = [8, 14], strides = [1, 1]} : vector<16x14xf32> to vector<8x14xf32>
    %19 = math.tanh %18 : vector<8x14xf32>
    %20 = vector.extract_strided_slice %17 {offsets = [8, 0], sizes = [8, 14], strides = [1, 1]} : vector<16x14xf32> to vector<8x14xf32>
    %21 = arith.negf %20 : vector<8x14xf32>
    %22 = math.exp %21 : vector<8x14xf32>
    %cst_19 = arith.constant 1.000000e+00 : f32
    %23 = vector.broadcast %cst_19 : f32 to vector<8x14xf32>
    %24 = arith.addf %23, %22 : vector<8x14xf32>
    %25 = arith.divf %23, %24 : vector<8x14xf32>
    %26 = arith.mulf %19, %25 : vector<8x14xf32>
    %27 = arith.truncf %26 : vector<8x14xf32> to vector<8x14xbf16>
    %cst_20 = arith.constant dense<0.000000e+00> : vector<16x14xf32>
    %28 = tpu.matmul %10, %27, %cst_20 {dimension_numbers = #tpu.dot_dimension_numbers<[1], [0], [0], [1], [0, 0, 1, 1], [], []>} : vector<16x8xbf16>, vector<8x14xbf16>, vector<16x14xf32> -> vector<16x14xf32>
    %29 = vector.extract_strided_slice %28 {offsets = [0, 0], sizes = [8, 14], strides = [1, 1]} : vector<16x14xf32> to vector<8x14xf32>
    %30 = arith.extf %3 : vector<8x14xbf16> to vector<8x14xf32>
    %31 = arith.addf %29, %30 : vector<8x14xf32>
    %32 = vector.extract_strided_slice %28 {offsets = [8, 0], sizes = [8, 14], strides = [1, 1]} : vector<16x14xf32> to vector<8x14xf32>
    %33 = arith.truncf %31 : vector<8x14xf32> to vector<8x14xbf16>
    %c0_21 = arith.constant 0 : index
    %c0_22 = arith.constant 0 : index
    %c0_23 = arith.constant 0 : index
    %34 = vector.load %arg8[%c0_21, %c0_22, %c0_23] : memref<1x8x14xbf16, #tpu.memory_space<vmem>>, vector<1x8x14xbf16>
    %35 = vector.shape_cast %34 : vector<1x8x14xbf16> to vector<8x14xbf16>
    %36 = vector.shape_cast %33 : vector<8x14xbf16> to vector<1x8x14xbf16>
    tpu.vector_store %arg8[%c0_21, %c0_22, %c0_23], %36 {strides = array<i32>} : memref<1x8x14xbf16, #tpu.memory_space<vmem>>, vector<1x8x14xbf16>,
    %37 = arith.truncf %32 : vector<8x14xf32> to vector<8x14xbf16>
    %c0_24 = arith.constant 0 : index
    %c0_25 = arith.constant 0 : index
    %c0_26 = arith.constant 0 : index
    %38 = vector.load %arg9[%c0_24, %c0_25, %c0_26] : memref<1x8x14xbf16, #tpu.memory_space<vmem>>, vector<1x8x14xbf16>
    %39 = vector.shape_cast %38 : vector<1x8x14xbf16> to vector<8x14xbf16>
    %40 = vector.shape_cast %37 : vector<8x14xbf16> to vector<1x8x14xbf16>
    tpu.vector_store %arg9[%c0_24, %c0_25, %c0_26], %40 {strides = array<i32>} : memref<1x8x14xbf16, #tpu.memory_space<vmem>>, vector<1x8x14xbf16>,
    return
  }
  func.func @transform_0(%arg0: i32) -> (i32, i32, i32) {
    %c0_i32 = arith.constant 0 : i32
    %c0_i32_0 = arith.constant 0 : i32
    %c0_i32_1 = arith.constant 0 : i32
    return %arg0, %c0_i32, %c0_i32_0 : i32, i32, i32
  }
  func.func @transform_1(%arg0: i32) -> (i32, i32, i32) {
    %c0_i32 = arith.constant 0 : i32
    %c0_i32_0 = arith.constant 0 : i32
    %c0_i32_1 = arith.constant 0 : i32
    return %arg0, %c0_i32, %c0_i32_0 : i32, i32, i32
  }
  func.func @transform_2(%arg0: i32) -> (i32, i32) {
    %c0_i32 = arith.constant 0 : i32
    %c0_i32_0 = arith.constant 0 : i32
    %c0_i32_1 = arith.constant 0 : i32
    return %c0_i32, %c0_i32_0 : i32, i32
  }
  func.func @transform_3(%arg0: i32) -> (i32, i32) {
    %c0_i32 = arith.constant 0 : i32
    %c0_i32_0 = arith.constant 0 : i32
    %c0_i32_1 = arith.constant 0 : i32
    return %c0_i32, %c0_i32_0 : i32, i32
  }
  func.func @transform_4(%arg0: i32) -> (i32, i32) {
    %c0_i32 = arith.constant 0 : i32
    %c0_i32_0 = arith.constant 0 : i32
    %c0_i32_1 = arith.constant 0 : i32
    return %c0_i32, %c0_i32_0 : i32, i32
  }
  func.func @transform_5(%arg0: i32) -> (i32, i32) {
    %c0_i32 = arith.constant 0 : i32
    %c0_i32_0 = arith.constant 0 : i32
    %c0_i32_1 = arith.constant 0 : i32
    return %c0_i32, %c0_i32_0 : i32, i32
  }
  func.func @transform_6(%arg0: i32) -> (i32, i32) {
    %c0_i32 = arith.constant 0 : i32
    %c0_i32_0 = arith.constant 0 : i32
    %c0_i32_1 = arith.constant 0 : i32
    return %c0_i32, %c0_i32_0 : i32, i32
  }
  func.func @transform_7(%arg0: i32) -> (i32, i32, i32) {
    %c0_i32 = arith.constant 0 : i32
    %c0_i32_0 = arith.constant 0 : i32
    %c0_i32_1 = arith.constant 0 : i32
    return %arg0, %c0_i32, %c0_i32_0 : i32, i32, i32
  }
  func.func @transform_8(%arg0: i32) -> (i32, i32, i32) {
    %c0_i32 = arith.constant 0 : i32
    %c0_i32_0 = arith.constant 0 : i32
    %c0_i32_1 = arith.constant 0 : i32
    return %arg0, %c0_i32, %c0_i32_0 : i32, i32, i32
  }
}

</mosaic_0001>

<llo_original>
// kernel: tpu_custom_call.1
$region0: #{tpu_custom_call.1}
  #allocation0 [shape = 'u32[]', space=smem, size = 0x4, offset = 0x4, fixed_abs, tag = 'smem constant byte address 0x4 - core index']
  #allocation1 [shape = 'u32[144,128]{1,0:T(1,128)}', space=vmem, size = 0x12000, scoped, tag = 'internal scratch']
  %s0 = inlined_call_operand.vmem [shape: bf16[2,8,16], index: 0, kind: input, shape index: {}]
  %s1 = inlined_call_operand.vmem [shape: bf16[2,6,16], index: 1, kind: input, shape index: {}]
  %s2 = inlined_call_operand.vmem [shape: bf16[16,8], index: 2, kind: input, shape index: {}]
  %s3 = inlined_call_operand.vmem [shape: bf16[16,8], index: 3, kind: input, shape index: {}]
  %s4 = inlined_call_operand.vmem [shape: bf16[16,6], index: 4, kind: input, shape index: {}]
  %s5 = inlined_call_operand.vmem [shape: f32[16,1], index: 5, kind: input, shape index: {}]
  %s6 = inlined_call_operand.vmem [shape: bf16[16,8], index: 6, kind: input, shape index: {}]
  %s7 = inlined_call_operand.hbm [shape: bf16[2,8,14], index: 7, kind: output, shape index: {0}]
  %s8 = inlined_call_operand.hbm [shape: bf16[2,8,14], index: 8, kind: output, shape index: {1}]
  %9 = xla_tuple %s7, %s8
  %s10 = sld [smem:[#allocation0]]
  $region69: #{tpu_custom_call.1} parent=0
    _
  %s12 = ssub.s32 1, %s10
  %s13 = scalar_select 0, %s12, %s10
  $region1: #{tpu_custom_call.1} parent=0
    #allocation2 [shape = 'u8[4096]{0}', space=vmem, size = 0x1000, scoped, tag = 'output window, operand 0']
    #allocation3 [shape = 's32[2]{0}', space=sflag, size = 0x8, scoped, tag = 'scoped memory for tpu_custom_call.1']
    #allocation4 [shape = 'u8[4096]{0}', space=vmem, size = 0x1000, scoped, tag = 'output window, operand 1']
    #allocation5 [shape = 's32[2]{0}', space=sflag, size = 0x8, scoped, tag = 'scoped memory for tpu_custom_call.1']
    %14 = vsyncpa [#allocation3], 0
    %s15 = scalar_lea.sflag [#allocation3], 1
    %16 = vsyncpa %s15, 0
    %17 = vsyncpa [#allocation5], 0
    %s18 = scalar_lea.sflag [#allocation5], 1
    %19 = vsyncpa %s18, 0
    loop: start=0, step=1, limit=4
    $region2: #{tpu_custom_call.1} parent=1 // loop_pre_header
      _
    $region3: #{tpu_custom_call.1} parent=1 // loop_header
      %s21 = sphi 0, %s25
      %p22 = scmp.ge.s32.totalorder %s21, 4
      %s31 = sphi 0, %s33
      %s34 = sphi 0, %s31
      %s35 = sphi 0, %s34
      %s51 = sphi 0, %s35
      %s57 = sphi 0, %s59
      %s60 = sphi 0, %s57
      %s61 = sphi 0, %s60
      %s77 = sphi 0, %s61
      %s81 = sphi 0, %s81
      %s83 = sphi 0, %s81
      %s84 = sphi 0, %s83
      %s98 = sphi 0, %s84
      %s102 = sphi 0, %s102
      %s104 = sphi 0, %s102
      %s105 = sphi 0, %s104
      %s119 = sphi 0, %s105
      %s123 = sphi 0, %s123
      %s125 = sphi 0, %s123
      %s126 = sphi 0, %s125
      %s140 = sphi 0, %s126
      %s144 = sphi 0, %s144
      %s146 = sphi 0, %s144
      %s147 = sphi 0, %s146
      %s161 = sphi 0, %s147
      %s165 = sphi 0, %s165
      %s167 = sphi 0, %s165
      %s168 = sphi 0, %s167
      %s182 = sphi 0, %s168
      %s188 = sphi 0, %s190
      %s191 = sphi 0, %s188
      %s192 = sphi 0, %s191
      %s208 = sphi 0, %s192
      %s214 = sphi 0, %s216
      %s217 = sphi 0, %s214
      %s218 = sphi 0, %s217
      %s234 = sphi 0, %s218
    $region4: #{tpu_custom_call.1} parent=1 // loop_header_branch
      %24 = sbr.rel (%p22) target = $region8
    $region5: #{tpu_custom_call.1} parent=1 // loop_body
      %s26 = ssub.s32 %s21, 1
      %s27 = ssub.s32 %s21, 2
      %s28 = sadd.s32 %s21, 1
      %s29 = ssub.s32 %s21, %s28
      %p30 = scmp.eq.s32.totalorder %s29, 0
      %s32 = sadd.s32 %s31, 1
      %s33 = scalar_select %p30, %s31, %s32
      %p36 = pneg %p30
      %p37 = scmp.eq.s32.totalorder %s21, 1
      %p38 = por %p36, %p37
      %p39 = scmp.ne.s32.totalorder %s31, %s34
      %p40 = scmp.eq.s32.totalorder %s21, 0
      %p41 = por %p39, %p40
      %p42 = scmp.ne.s32.totalorder %s31, %s34
      %p43 = scmp.eq.s32.totalorder %s26, 1
      %p44 = por %p42, %p43
      %p45 = scmp.ne.s32.totalorder %s34, %s35
      %p46 = scmp.eq.s32.totalorder %s26, 0
      %p47 = por %p45, %p46
      %p48 = scmp.ne.s32.totalorder %s34, %s35
      %p49 = scmp.eq.s32.totalorder %s27, 1
      %p50 = por %p48, %p49
      %p52 = scmp.ne.s32.totalorder %s35, %s51
      %p53 = scmp.eq.s32.totalorder %s27, 0
      %p54 = por %p52, %p53
      %s55 = ssub.s32 %s21, %s28
      %p56 = scmp.eq.s32.totalorder %s55, 0
      %s58 = sadd.s32 %s57, 1
      %s59 = scalar_select %p56, %s57, %s58
      %p62 = pneg %p56
      %p63 = scmp.eq.s32.totalorder %s21, 1
      %p64 = por %p62, %p63
      %p65 = scmp.ne.s32.totalorder %s57, %s60
      %p66 = scmp.eq.s32.totalorder %s21, 0
      %p67 = por %p65, %p66
      %p68 = scmp.ne.s32.totalorder %s57, %s60
      %p69 = scmp.eq.s32.totalorder %s26, 1
      %p70 = por %p68, %p69
      %p71 = scmp.ne.s32.totalorder %s60, %s61
      %p72 = scmp.eq.s32.totalorder %s26, 0
      %p73 = por %p71, %p72
      %p74 = scmp.ne.s32.totalorder %s60, %s61
      %p75 = scmp.eq.s32.totalorder %s27, 1
      %p76 = por %p74, %p75
      %p78 = scmp.ne.s32.totalorder %s61, %s77
      %p79 = scmp.eq.s32.totalorder %s27, 0
      %p80 = por %p78, %p79
      %s82 = sadd.s32 %s81, 1
      %p85 = scmp.eq.s32.totalorder %s21, 1
      %p86 = scmp.ne.s32.totalorder %s81, %s83
      %p87 = scmp.eq.s32.totalorder %s21, 0
      %p88 = por %p86, %p87
      %p89 = scmp.ne.s32.totalorder %s81, %s83
      %p90 = scmp.eq.s32.totalorder %s26, 1
      %p91 = por %p89, %p90
      %p92 = scmp.ne.s32.totalorder %s83, %s84
      %p93 = scmp.eq.s32.totalorder %s26, 0
      %p94 = por %p92, %p93
      %p95 = scmp.ne.s32.totalorder %s83, %s84
      %p96 = scmp.eq.s32.totalorder %s27, 1
      %p97 = por %p95, %p96
      %p99 = scmp.ne.s32.totalorder %s84, %s98
      %p100 = scmp.eq.s32.totalorder %s27, 0
      %p101 = por %p99, %p100
      %s103 = sadd.s32 %s102, 1
      %p106 = scmp.eq.s32.totalorder %s21, 1
      %p107 = scmp.ne.s32.totalorder %s102, %s104
      %p108 = scmp.eq.s32.totalorder %s21, 0
      %p109 = por %p107, %p108
      %p110 = scmp.ne.s32.totalorder %s102, %s104
      %p111 = scmp.eq.s32.totalorder %s26, 1
      %p112 = por %p110, %p111
      %p113 = scmp.ne.s32.totalorder %s104, %s105
      %p114 = scmp.eq.s32.totalorder %s26, 0
      %p115 = por %p113, %p114
      %p116 = scmp.ne.s32.totalorder %s104, %s105
      %p117 = scmp.eq.s32.totalorder %s27, 1
      %p118 = por %p116, %p117
      %p120 = scmp.ne.s32.totalorder %s105, %s119
      %p121 = scmp.eq.s32.totalorder %s27, 0
      %p122 = por %p120, %p121
      %s124 = sadd.s32 %s123, 1
      %p127 = scmp.eq.s32.totalorder %s21, 1
      %p128 = scmp.ne.s32.totalorder %s123, %s125
      %p129 = scmp.eq.s32.totalorder %s21, 0
      %p130 = por %p128, %p129
      %p131 = scmp.ne.s32.totalorder %s123, %s125
      %p132 = scmp.eq.s32.totalorder %s26, 1
      %p133 = por %p131, %p132
      %p134 = scmp.ne.s32.totalorder %s125, %s126
      %p135 = scmp.eq.s32.totalorder %s26, 0
      %p136 = por %p134, %p135
      %p137 = scmp.ne.s32.totalorder %s125, %s126
      %p138 = scmp.eq.s32.totalorder %s27, 1
      %p139 = por %p137, %p138
      %p141 = scmp.ne.s32.totalorder %s126, %s140
      %p142 = scmp.eq.s32.totalorder %s27, 0
      %p143 = por %p141, %p142
      %s145 = sadd.s32 %s144, 1
      %p148 = scmp.eq.s32.totalorder %s21, 1
      %p149 = scmp.ne.s32.totalorder %s144, %s146
      %p150 = scmp.eq.s32.totalorder %s21, 0
      %p151 = por %p149, %p150
      %p152 = scmp.ne.s32.totalorder %s144, %s146
      %p153 = scmp.eq.s32.totalorder %s26, 1
      %p154 = por %p152, %p153
      %p155 = scmp.ne.s32.totalorder %s146, %s147
      %p156 = scmp.eq.s32.totalorder %s26, 0
      %p157 = por %p155, %p156
      %p158 = scmp.ne.s32.totalorder %s146, %s147
      %p159 = scmp.eq.s32.totalorder %s27, 1
      %p160 = por %p158, %p159
      %p162 = scmp.ne.s32.totalorder %s147, %s161
      %p163 = scmp.eq.s32.totalorder %s27, 0
      %p164 = por %p162, %p163
      %s166 = sadd.s32 %s165, 1
      %p169 = scmp.eq.s32.totalorder %s21, 1
      %p170 = scmp.ne.s32.totalorder %s165, %s167
      %p171 = scmp.eq.s32.totalorder %s21, 0
      %p172 = por %p170, %p171
      %p173 = scmp.ne.s32.totalorder %s165, %s167
      %p174 = scmp.eq.s32.totalorder %s26, 1
      %p175 = por %p173, %p174
      %p176 = scmp.ne.s32.totalorder %s167, %s168
      %p177 = scmp.eq.s32.totalorder %s26, 0
      %p178 = por %p176, %p177
      %p179 = scmp.ne.s32.totalorder %s167, %s168
      %p180 = scmp.eq.s32.totalorder %s27, 1
      %p181 = por %p179, %p180
      %p183 = scmp.ne.s32.totalorder %s168, %s182
      %p184 = scmp.eq.s32.totalorder %s27, 0
      %p185 = por %p183, %p184
      %s186 = ssub.s32 %s21, %s28
      %p187 = scmp.eq.s32.totalorder %s186, 0
      %s189 = sadd.s32 %s188, 1
      %s190 = scalar_select %p187, %s188, %s189
      %p193 = pneg %p187
      %p194 = scmp.eq.s32.totalorder %s21, 1
      %p195 = por %p193, %p194
      %p196 = scmp.ne.s32.totalorder %s188, %s191
      %p197 = scmp.eq.s32.totalorder %s21, 0
      %p198 = por %p196, %p197
      %p199 = scmp.ne.s32.totalorder %s188, %s191
      %p200 = scmp.eq.s32.totalorder %s26, 1
      %p201 = por %p199, %p200
      %p202 = scmp.ne.s32.totalorder %s191, %s192
      %p203 = scmp.eq.s32.totalorder %s26, 0
      %p204 = por %p202, %p203
      %p205 = scmp.ne.s32.totalorder %s191, %s192
      %p206 = scmp.eq.s32.totalorder %s27, 1
      %p207 = por %p205, %p206
      %p209 = scmp.ne.s32.totalorder %s192, %s208
      %p210 = scmp.eq.s32.totalorder %s27, 0
      %p211 = por %p209, %p210
      %s212 = ssub.s32 %s21, %s28
      %p213 = scmp.eq.s32.totalorder %s212, 0
      %s215 = sadd.s32 %s214, 1
      %s216 = scalar_select %p213, %s214, %s215
      %p219 = pneg %p213
      %p220 = scmp.eq.s32.totalorder %s21, 1
      %p221 = por %p219, %p220
      %p222 = scmp.ne.s32.totalorder %s214, %s217
      %p223 = scmp.eq.s32.totalorder %s21, 0
      %p224 = por %p222, %p223
      %p225 = scmp.ne.s32.totalorder %s214, %s217
      %p226 = scmp.eq.s32.totalorder %s26, 1
      %p227 = por %p225, %p226
      %p228 = scmp.ne.s32.totalorder %s217, %s218
      %p229 = scmp.eq.s32.totalorder %s26, 0
      %p230 = por %p228, %p229
      %p231 = scmp.ne.s32.totalorder %s217, %s218
      %p232 = scmp.eq.s32.totalorder %s27, 1
      %p233 = por %p231, %p232
      %p235 = scmp.ne.s32.totalorder %s218, %s234
      %p236 = scmp.eq.s32.totalorder %s27, 0
      %p237 = por %p235, %p236
      %p238 = scmp.le.s32.totalorder 1, %s21
      %p239 = scmp.lt.s32.totalorder %s21, 3
      %p240 = pnand %p238, %p239
      %p241 = pneg %p240
      // Predicated region
      $region9: #{tpu_custom_call.1} parent=5 // pred_check
        _
      $region10: #{tpu_custom_call.1} parent=5 // pred_check_branch
        %243 = sbr.rel (%p240) target = $region12
      $region11: #{tpu_custom_call.1} parent=5 // pred_region
        %s244 = ssub.s32 %s21, 1
        // Predicated region
        $region13: #{tpu_custom_call.1} parent=11 // pred_check
          %p245 = pneg %p94
        $region14: #{tpu_custom_call.1} parent=11 // pred_check_branch
          %247 = sbr.rel (%p245) target = $region16
        $region15: #{tpu_custom_call.1} parent=11 // pred_region
          _
        $region16: #{tpu_custom_call.1} parent=11 // pred_fallthru
          _
        // Predicated region
        $region17: #{tpu_custom_call.1} parent=11 // pred_check
          %p248 = pneg %p115
        $region18: #{tpu_custom_call.1} parent=11 // pred_check_branch
          %250 = sbr.rel (%p248) target = $region20
        $region19: #{tpu_custom_call.1} parent=11 // pred_region
          _
        $region20: #{tpu_custom_call.1} parent=11 // pred_fallthru
          _
        // Predicated region
        $region21: #{tpu_custom_call.1} parent=11 // pred_check
          %p251 = pneg %p136
        $region22: #{tpu_custom_call.1} parent=11 // pred_check_branch
          %253 = sbr.rel (%p251) target = $region24
        $region23: #{tpu_custom_call.1} parent=11 // pred_region
          _
        $region24: #{tpu_custom_call.1} parent=11 // pred_fallthru
          _
        // Predicated region
        $region25: #{tpu_custom_call.1} parent=11 // pred_check
          %p254 = pneg %p157
        $region26: #{tpu_custom_call.1} parent=11 // pred_check_branch
          %256 = sbr.rel (%p254) target = $region28
        $region27: #{tpu_custom_call.1} parent=11 // pred_region
          _
        $region28: #{tpu_custom_call.1} parent=11 // pred_fallthru
          _
        // Predicated region
        $region29: #{tpu_custom_call.1} parent=11 // pred_check
          %p257 = pneg %p178
        $region30: #{tpu_custom_call.1} parent=11 // pred_check_branch
          %259 = sbr.rel (%p257) target = $region32
        $region31: #{tpu_custom_call.1} parent=11 // pred_region
          _
        $region32: #{tpu_custom_call.1} parent=11 // pred_fallthru
          _
      $region12: #{tpu_custom_call.1} parent=5 // pred_fallthru
        _
      %p260 = scmp.lt.s32.totalorder %s21, 2
      // Predicated region
      $region33: #{tpu_custom_call.1} parent=5 // pred_check
        %p261 = pneg %p260
      $region34: #{tpu_custom_call.1} parent=5 // pred_check_branch
        %263 = sbr.rel (%p261) target = $region36
      $region35: #{tpu_custom_call.1} parent=5 // pred_region
        // Predicated region
        $region37: #{tpu_custom_call.1} parent=35 // pred_check
          %p264 = pneg %p41
        $region38: #{tpu_custom_call.1} parent=35 // pred_check_branch
          %266 = sbr.rel (%p264) target = $region40
        $region39: #{tpu_custom_call.1} parent=35 // pred_region
          %p267 = scmp.lt.s32.totalorder %s21, 1
          %s268 = scalar_select %p267, %s21, 1
          %s269 = smul.addr %s268, 4
          %s270 = scalar_lea.vmem %s0, %s269
        $region40: #{tpu_custom_call.1} parent=35 // pred_fallthru
          _
        // Predicated region
        $region41: #{tpu_custom_call.1} parent=35 // pred_check
          %p271 = pneg %p67
        $region42: #{tpu_custom_call.1} parent=35 // pred_check_branch
          %273 = sbr.rel (%p271) target = $region44
        $region43: #{tpu_custom_call.1} parent=35 // pred_region
          %p274 = scmp.lt.s32.totalorder %s21, 1
          %s275 = scalar_select %p274, %s21, 1
          %s276 = smul.addr %s275, 4
          %s277 = scalar_lea.vmem %s1, %s276
        $region44: #{tpu_custom_call.1} parent=35 // pred_fallthru
          _
      $region36: #{tpu_custom_call.1} parent=5 // pred_fallthru
        _
      %p278 = scmp.le.s32.totalorder 1, %s21
      %p279 = scmp.lt.s32.totalorder %s21, 3
      %p280 = pnand %p278, %p279
      %p281 = pneg %p280
      // Predicated region
      $region45: #{tpu_custom_call.1} parent=5 // pred_check
        _
      $region46: #{tpu_custom_call.1} parent=5 // pred_check_branch
        %283 = sbr.rel (%p280) target = $region48
      $region47: #{tpu_custom_call.1} parent=5 // pred_region
        %s284 = ssub.s32 %s21, 1
        %p285 = scmp.lt.s32.totalorder %s26, 1
        %s286 = scalar_select %p285, %s26, 1
        %s287 = smul.addr %s286, 4
        %s288 = scalar_lea.vmem %s0, %s287
        %p289 = pneg %p47
        %p290 = pneg %p44
        %p291 = scmp.lt.s32.totalorder %s26, 1
        %s292 = scalar_select %p291, %s26, 1
        %s293 = smul.addr %s292, 4
        %s294 = scalar_lea.vmem %s1, %s293
        %p295 = pneg %p73
        %p296 = pneg %p70
        %p297 = pneg %p94
        %p298 = pneg %p91
        %p299 = pneg %p115
        %p300 = pneg %p112
        %p301 = pneg %p136
        %p302 = pneg %p133
        %p303 = pneg %p157
        %p304 = pneg %p154
        %p305 = pneg %p178
        %p306 = pneg %p175
        %p307 = pneg %p204
        %p308 = pneg %p201
        %s309 = sand.u32 %s191, 1
        %s310 = scalar_lea.sflag [#allocation3], %s309
        %s311 = sand.u32 %s191, 1
        %s312 = smul.addr %s311, 4
        %s313 = scalar_lea.vmem [#allocation2], %s312
        %p314 = pneg %p230
        %p315 = pneg %p227
        %s316 = sand.u32 %s217, 1
        %s317 = scalar_lea.sflag [#allocation5], %s316
        %s318 = sand.u32 %s217, 1
        %s319 = smul.addr %s318, 4
        %s320 = scalar_lea.vmem [#allocation4], %s319
        %p321 = scmp.lt.s32.totalorder %s26, 1
        %s322 = scalar_select %p321, %s26, 1
        %s323 = smul.addr %s322, 4
        %s324 = scalar_lea.vmem %s0, %s323
        %p325 = scmp.lt.s32.totalorder %s26, 1
        %s326 = scalar_select %p325, %s26, 1
        %s327 = smul.addr %s326, 4
        %s328 = scalar_lea.vmem %s1, %s327
        %v330 = vld [vmem:[%s324] sm:$0xf]
        %v331 = vld [vmem:[%s328] sm:$0x7]
        %v332 = vld [vmem:[%s2] sm:$0xf]
        %v333 = vld [vmem:[%s2 + $0x4] sm:$0xf]
        %v334 = vld [vmem:[%s3] sm:$0xf]
        %v335 = vld [vmem:[%s3 + $0x4] sm:$0xf]
        %v336 = vld [vmem:[%s4] sm:$0xf]
        %v337 = vld [vmem:[%s4 + $0x4] sm:$0xf]
        %v338 = vld [vmem:[%s5] sm:$0xff]
        %v339 = vld [vmem:[%s5 + $0x8] sm:$0xff]
        %v340 = vld [vmem:[%s6] sm:$0xf]
        %v341 = vld [vmem:[%s6 + $0x4] sm:$0xf]
        %v344 = vunpack.c.l.b16 %v334
        %v345 = vunpack.c.l.b16 %v335
        %v346 = vpack.c.b16 %v345, %v344
        %v348 = vunpack.c.l.b16 %v330
        %v349 = vpack.c.b16 %v348, %v348
        %350 = vrot.lane.b32.xlu0 %v349, 126
        %v351 = vpop.permute.xlu0 %350
        %vm352 = vcmask 64512
        %v354 = vsel %vm352, %v346, 0
        %vm356 = vcmask 1043456
        %v358 = vsel %vm356, %v351, 0
        %360 = vmatprep.subr.bf16.mxu0 0
        %361 = vmatpush1.bf16.msra.mxu0 %v358
        %362 = vmatprep.subr.bf16.mxu0 0
        %363 = vmatpush1.bf16.msra.mxu0 0
        %364 = vmatprep.subr.bf16.mxu0 0
        %365 = vmatpush1.bf16.msra.mxu0 0
        %366 = vmatprep.subr.bf16.mxu0 0
        %367 = vmatpush1.bf16.msra.mxu0 0
        %368 = vmatprep.subr.bf16.mxu0 0
        %369 = vmatpush1.bf16.msra.mxu0 0
        %370 = vmatprep.subr.bf16.mxu0 0
        %371 = vmatpush1.bf16.msra.mxu0 0
        %372 = vmatprep.subr.bf16.mxu0 0
        %373 = vmatpush1.bf16.msra.mxu0 0
        %374 = vmatprep.subr.bf16.mxu0 0
        %375 = vmatpush1.bf16.msra.mxu0 0
        %376 = vmatprep.subr.bf16.mxu0 0
        %377 = vmatpush1.bf16.msra.mxu0 0
        %378 = vmatprep.subr.bf16.mxu0 0
        %379 = vmatpush1.bf16.msra.mxu0 0
        %380 = vmatprep.subr.bf16.mxu0 0
        %381 = vmatpush1.bf16.msra.mxu0 0
        %382 = vmatprep.subr.bf16.mxu0 0
        %383 = vmatpush1.bf16.msra.mxu0 0
        %384 = vmatprep.subr.bf16.mxu0 0
        %385 = vmatpush1.bf16.msra.mxu0 0
        %386 = vmatprep.subr.bf16.mxu0 0
        %387 = vmatpush1.bf16.msra.mxu0 0
        %388 = vmatprep.subr.bf16.mxu0 0
        %389 = vmatpush1.bf16.msra.mxu0 0
        %390 = vmatprep.subr.bf16.mxu0 0
        %391 = vmatpush1.bf16.msra.mxu0 0
        %392 = vmatprep.mubr.bf16.mxu0 0
        %393 = vmatmul.mubr.bf16.gmra.mrb[0].mxu0 %v354
        %v394 = vpop.f32.mrb[0].mxu0
        %v395 = vadd.f32 0.0, %v394
        %v396 = vpop.f32.mrb[0].mxu0
        %v397 = vpop.f32.mrb[0].mxu0
        %v398 = vadd.f32 0.0, %v397
        %v399 = vpop.f32.mrb[0].mxu0
        %400 = vdwg.mxu0
        %v403 = vunpack.c.l.b16 %v332
        %v404 = vunpack.c.l.b16 %v333
        %v405 = vpack.c.b16 %v404, %v403
        %v407 = vsel %vm352, %v405, 0
        %v410 = vsel %vm356, %v330, 0
        %412 = vmatprep.subr.bf16.mxu0 0
        %413 = vmatpush1.bf16.msra.mxu0 %v410
        %414 = vmatprep.subr.bf16.mxu0 0
        %415 = vmatpush1.bf16.msra.mxu0 0
        %416 = vmatprep.subr.bf16.mxu0 0
        %417 = vmatpush1.bf16.msra.mxu0 0
        %418 = vmatprep.subr.bf16.mxu0 0
        %419 = vmatpush1.bf16.msra.mxu0 0
        %420 = vmatprep.subr.bf16.mxu0 0
        %421 = vmatpush1.bf16.msra.mxu0 0
        %422 = vmatprep.subr.bf16.mxu0 0
        %423 = vmatpush1.bf16.msra.mxu0 0
        %424 = vmatprep.subr.bf16.mxu0 0
        %425 = vmatpush1.bf16.msra.mxu0 0
        %426 = vmatprep.subr.bf16.mxu0 0
        %427 = vmatpush1.bf16.msra.mxu0 0
        %428 = vmatprep.subr.bf16.mxu0 0
        %429 = vmatpush1.bf16.msra.mxu0 0
        %430 = vmatprep.subr.bf16.mxu0 0
        %431 = vmatpush1.bf16.msra.mxu0 0
        %432 = vmatprep.subr.bf16.mxu0 0
        %433 = vmatpush1.bf16.msra.mxu0 0
        %434 = vmatprep.subr.bf16.mxu0 0
        %435 = vmatpush1.bf16.msra.mxu0 0
        %436 = vmatprep.subr.bf16.mxu0 0
        %437 = vmatpush1.bf16.msra.mxu0 0
        %438 = vmatprep.subr.bf16.mxu0 0
        %439 = vmatpush1.bf16.msra.mxu0 0
        %440 = vmatprep.subr.bf16.mxu0 0
        %441 = vmatpush1.bf16.msra.mxu0 0
        %442 = vmatprep.subr.bf16.mxu0 0
        %443 = vmatpush1.bf16.msra.mxu0 0
        %444 = vmatprep.mubr.bf16.mxu0 0
        %445 = vmatmul.mubr.bf16.gmra.mrb[0].mxu0 %v407
        %v446 = vpop.f32.mrb[0].mxu0
        %v447 = vadd.f32 %v395, %v446
        %v448 = vpop.f32.mrb[0].mxu0
        %v449 = vpop.f32.mrb[0].mxu0
        %v450 = vadd.f32 %v398, %v449
        %v451 = vpop.f32.mrb[0].mxu0
        %452 = vdwg.mxu0
        %v455 = vunpack.c.l.b16 %v336
        %v456 = vunpack.c.l.b16 %v337
        %v457 = vpack.c.b16 %v456, %v455
        %v459 = vunpack.c.l.b16 %v331
        %v460 = vpack.c.b16 %v459, %v459
        %461 = vrot.lane.b32.xlu0 %v460, 126
        %v462 = vpop.permute.xlu0 %461
        %vm463 = vcmask 48128
        %v465 = vsel %vm463, %v457, 0
        %vm467 = vcmask 1042432
        %v469 = vsel %vm467, %v462, 0
        %471 = vmatprep.subr.bf16.mxu0 0
        %472 = vmatpush1.bf16.msra.mxu0 %v469
        %473 = vmatprep.subr.bf16.mxu0 0
        %474 = vmatpush1.bf16.msra.mxu0 0
        %475 = vmatprep.subr.bf16.mxu0 0
        %476 = vmatpush1.bf16.msra.mxu0 0
        %477 = vmatprep.subr.bf16.mxu0 0
        %478 = vmatpush1.bf16.msra.mxu0 0
        %479 = vmatprep.subr.bf16.mxu0 0
        %480 = vmatpush1.bf16.msra.mxu0 0
        %481 = vmatprep.subr.bf16.mxu0 0
        %482 = vmatpush1.bf16.msra.mxu0 0
        %483 = vmatprep.subr.bf16.mxu0 0
        %484 = vmatpush1.bf16.msra.mxu0 0
        %485 = vmatprep.subr.bf16.mxu0 0
        %486 = vmatpush1.bf16.msra.mxu0 0
        %487 = vmatprep.subr.bf16.mxu0 0
        %488 = vmatpush1.bf16.msra.mxu0 0
        %489 = vmatprep.subr.bf16.mxu0 0
        %490 = vmatpush1.bf16.msra.mxu0 0
        %491 = vmatprep.subr.bf16.mxu0 0
        %492 = vmatpush1.bf16.msra.mxu0 0
        %493 = vmatprep.subr.bf16.mxu0 0
        %494 = vmatpush1.bf16.msra.mxu0 0
        %495 = vmatprep.subr.bf16.mxu0 0
        %496 = vmatpush1.bf16.msra.mxu0 0
        %497 = vmatprep.subr.bf16.mxu0 0
        %498 = vmatpush1.bf16.msra.mxu0 0
        %499 = vmatprep.subr.bf16.mxu0 0
        %500 = vmatpush1.bf16.msra.mxu0 0
        %501 = vmatprep.subr.bf16.mxu0 0
        %502 = vmatpush1.bf16.msra.mxu0 0
        %503 = vmatprep.mubr.bf16.mxu0 0
        %504 = vmatmul.mubr.bf16.gmra.mrb[0].mxu0 %v465
        %v505 = vpop.f32.mrb[0].mxu0
        %v506 = vadd.f32 0.0, %v505
        %v507 = vpop.f32.mrb[0].mxu0
        %v508 = vpop.f32.mrb[0].mxu0
        %v509 = vadd.f32 0.0, %v508
        %v510 = vpop.f32.mrb[0].mxu0
        %511 = vdwg.mxu0
        %v512 = vadd.f32 %v447, %v506
        %v513 = vadd.f32 %v450, %v509
        %515 = vset.pattern.permute.xlu0 0
        %516 = vperm.xlu0 %515, %v338
        %v517 = vpop.permute.xlu0 %516
        %520 = vset.pattern.permute.xlu0 0
        %521 = vperm.xlu0 %520, %v339
        %v522 = vpop.permute.xlu0 %521
        %v524 = vadd.f32 %v512, %v517
        %v525 = vadd.f32 %v513, %v522
        %v526 = vtanh.pop %v524
        %v527 = vxor.u32 %v525, 2147483648
        %v528 = vmul.f32 %v527, 1.442695
        %v529 = vpow.pop %v528
        %v530 = vadd.f32 %v529, 1.0
        %v531 = vrcp.pop %v530
        %v532 = vmul.f32 1.0, %v531
        %v533 = vmul.f32 %v526, %v532
        %v534 = vpack.c.bf16 %v533, %v533
        %v537 = vunpack.c.l.b16 %v340
        %v538 = vunpack.c.l.b16 %v341
        %v539 = vpack.c.b16 %v538, %v537
        %v541 = vsel %vm352, %v539, 0
        %v544 = vsel %vm356, %v534, 0
        %546 = vmatprep.subr.bf16.mxu0 0
        %547 = vmatpush1.bf16.msra.mxu0 %v544
        %548 = vmatprep.subr.bf16.mxu0 0
        %549 = vmatpush1.bf16.msra.mxu0 0
        %550 = vmatprep.subr.bf16.mxu0 0
        %551 = vmatpush1.bf16.msra.mxu0 0
        %552 = vmatprep.subr.bf16.mxu0 0
        %553 = vmatpush1.bf16.msra.mxu0 0
        %554 = vmatprep.subr.bf16.mxu0 0
        %555 = vmatpush1.bf16.msra.mxu0 0
        %556 = vmatprep.subr.bf16.mxu0 0
        %557 = vmatpush1.bf16.msra.mxu0 0
        %558 = vmatprep.subr.bf16.mxu0 0
        %559 = vmatpush1.bf16.msra.mxu0 0
        %560 = vmatprep.subr.bf16.mxu0 0
        %561 = vmatpush1.bf16.msra.mxu0 0
        %562 = vmatprep.subr.bf16.mxu0 0
        %563 = vmatpush1.bf16.msra.mxu0 0
        %564 = vmatprep.subr.bf16.mxu0 0
        %565 = vmatpush1.bf16.msra.mxu0 0
        %566 = vmatprep.subr.bf16.mxu0 0
        %567 = vmatpush1.bf16.msra.mxu0 0
        %568 = vmatprep.subr.bf16.mxu0 0
        %569 = vmatpush1.bf16.msra.mxu0 0
        %570 = vmatprep.subr.bf16.mxu0 0
        %571 = vmatpush1.bf16.msra.mxu0 0
        %572 = vmatprep.subr.bf16.mxu0 0
        %573 = vmatpush1.bf16.msra.mxu0 0
        %574 = vmatprep.subr.bf16.mxu0 0
        %575 = vmatpush1.bf16.msra.mxu0 0
        %576 = vmatprep.subr.bf16.mxu0 0
        %577 = vmatpush1.bf16.msra.mxu0 0
        %578 = vmatprep.mubr.bf16.mxu0 0
        %579 = vmatmul.mubr.bf16.gmra.mrb[0].mxu0 %v541
        %v580 = vpop.f32.mrb[0].mxu0
        %v581 = vadd.f32 0.0, %v580
        %v582 = vpop.f32.mrb[0].mxu0
        %v583 = vpop.f32.mrb[0].mxu0
        %v584 = vadd.f32 0.0, %v583
        %v585 = vpop.f32.mrb[0].mxu0
        %586 = vdwg.mxu0
        %v587 = vunpack.c.l.bf16 %v330
        %589 = vrot.lane.b32.xlu0 %v587, 126
        %v590 = vpop.permute.xlu0 %589
        %v592 = vadd.f32 %v581, %v590
        %v593 = vpack.c.bf16 %v592, %v592
        %vm594 = vcmask 109568
        %595 = vst.msk [vmem:[%s313] sm:$0xf] %vm594, %v593
        %v596 = vpack.c.bf16 %v584, %v584
        %597 = vst.msk [vmem:[%s320] sm:$0xf] %vm594, %v596
        %s598 = sand.u32 %s191, 1
        %s599 = scalar_lea.sflag [#allocation3], %s598
        %s600 = sand.u32 %s191, 1
        %s601 = smul.addr %s600, 4
        %s602 = scalar_lea.vmem [#allocation2], %s601
        %s603 = sand.u32 %s217, 1
        %s604 = scalar_lea.sflag [#allocation5], %s603
        %s605 = sand.u32 %s217, 1
        %s606 = smul.addr %s605, 4
        %s607 = scalar_lea.vmem [#allocation4], %s606
        // Predicated region
        $region49: #{tpu_custom_call.1} parent=47 // pred_check
          %p608 = pneg %p201
        $region50: #{tpu_custom_call.1} parent=47 // pred_check_branch
          %610 = sbr.rel (%p608) target = $region52
        $region51: #{tpu_custom_call.1} parent=47 // pred_region
          %s612 = ssub.s32 64, 64
          %613 = vsyncadd %s599, %s612
          %s614 = smul.addr %s26, 64
          %s615 = scalar_lea.hbm %s7, %s614
          %s617 = sshll.u32 %s602, 4
          %s618 = int_to_ptr.vmem [resolvable:$true] %s617
          %620 = dma.vmem_to_hbm [thread:$0]  %s618, 64, %s615, %s599
        $region52: #{tpu_custom_call.1} parent=47 // pred_fallthru
          _
        // Predicated region
        $region53: #{tpu_custom_call.1} parent=47 // pred_check
          %p621 = pneg %p227
        $region54: #{tpu_custom_call.1} parent=47 // pred_check_branch
          %623 = sbr.rel (%p621) target = $region56
        $region55: #{tpu_custom_call.1} parent=47 // pred_region
          %s625 = ssub.s32 64, 64
          %626 = vsyncadd %s604, %s625
          %s627 = smul.addr %s26, 64
          %s628 = scalar_lea.hbm %s8, %s627
          %s630 = sshll.u32 %s607, 4
          %s631 = int_to_ptr.vmem [resolvable:$true] %s630
          %633 = dma.vmem_to_hbm [thread:$0]  %s631, 64, %s628, %s604
        $region56: #{tpu_custom_call.1} parent=47 // pred_fallthru
          _
      $region48: #{tpu_custom_call.1} parent=5 // pred_fallthru
        _
      %p634 = scmp.le.s32.totalorder 2, %s21
      // Predicated region
      $region57: #{tpu_custom_call.1} parent=5 // pred_check
        %p635 = pneg %p634
      $region58: #{tpu_custom_call.1} parent=5 // pred_check_branch
        %637 = sbr.rel (%p635) target = $region60
      $region59: #{tpu_custom_call.1} parent=5 // pred_region
        %s638 = ssub.s32 %s21, 2
        // Predicated region
        $region61: #{tpu_custom_call.1} parent=59 // pred_check
          %p639 = pneg %p207
        $region62: #{tpu_custom_call.1} parent=59 // pred_check_branch
          %641 = sbr.rel (%p639) target = $region64
        $region63: #{tpu_custom_call.1} parent=59 // pred_region
          %s642 = sand.u32 %s192, 1
          %s643 = scalar_lea.sflag [#allocation3], %s642
          %s644 = sand.u32 %s192, 1
          %s645 = smul.addr %s644, 4
          %s646 = scalar_lea.vmem [#allocation2], %s645
          %647 = dma.done %s643, 64
        $region64: #{tpu_custom_call.1} parent=59 // pred_fallthru
          _
        // Predicated region
        $region65: #{tpu_custom_call.1} parent=59 // pred_check
          %p648 = pneg %p233
        $region66: #{tpu_custom_call.1} parent=59 // pred_check_branch
          %650 = sbr.rel (%p648) target = $region68
        $region67: #{tpu_custom_call.1} parent=59 // pred_region
          %s651 = sand.u32 %s218, 1
          %s652 = scalar_lea.sflag [#allocation5], %s651
          %s653 = sand.u32 %s218, 1
          %s654 = smul.addr %s653, 4
          %s655 = scalar_lea.vmem [#allocation4], %s654
          %656 = dma.done %s652, 64
        $region68: #{tpu_custom_call.1} parent=59 // pred_fallthru
          _
      $region60: #{tpu_custom_call.1} parent=5 // pred_fallthru
        _
    $region6: #{tpu_custom_call.1} parent=1 // loop_footer
      %s25 = sadd.s32 1, %s21
    $region7: #{tpu_custom_call.1} parent=1 // loop_footer_branch
      %20 = sbr.rel target = $region3
    $region8: #{tpu_custom_call.1} parent=1 // loop_exit
      _
    %657 = vsyncpa [#allocation3], 1
    %s658 = scalar_lea.sflag [#allocation3], 1
    %659 = vsyncpa %s658, 1
    %660 = vsyncpa [#allocation5], 1
    %s661 = scalar_lea.sflag [#allocation5], 1
    %662 = vsyncpa %s661, 1

</llo_original>
